<compile_context>
chip_gen: v5e
topology: v5e:2x2
jax: 0.10.0
libtpu: 0.0.40
codegen_flags: <defaults>
</compile_context>

<pallas_src>
import jax
import jax.numpy as jnp
from jax.experimental import pallas as pl
from jax.experimental.pallas import tpu as pltpu


def _onehot_matmul_kernel(y_ref, table_ref, mu_ref):
    """mu_block = one_hot(y_block) @ table   (bias already folded into table).

    y_ref     : [TB, 1] int32 (VMEM)  -- labels for this batch block
    table_ref : [C, k]  f32   (VMEM)  -- resident (same block every grid step)
    mu_ref    : [TB, k] f32
    """
    y = y_ref[...]                                        # [TB, 1]
    tb = y.shape[0]
    num_classes = table_ref.shape[0]
    classes = jax.lax.broadcasted_iota(jnp.int32, (tb, num_classes), 1)
    one_hot = (classes == y).astype(jnp.float32)          # [TB, C] in vregs
    mu_ref[...] = jnp.dot(one_hot, table_ref[...],
                          preferred_element_type=jnp.float32)


def prepare_backwards_encoder_params(weight, bias):
    """One-time layout prep (call once at module init, NOT per forward).

    weight : [k, num_classes] float32  (PyTorch nn.Linear layout)
    bias   : [k] float32
    Returns table [C, k] float32 with the bias folded in, so that
      one_hot(y) @ table  ==  one_hot(y) @ W^T + b   (one-hot rows sum to 1).
    """
    table = (jnp.asarray(weight, jnp.float32).T
             + jnp.asarray(bias, jnp.float32)[None, :])
    return table


def backwards_encoder(y, table, *, block_b=256):
    """
    y     : [B] int labels
    table : [C, k] float32 from prepare_backwards_encoder_params
    Returns ((mu, scale), mu) where scale is the lazy constant 1.0
    (Independent(Normal(mu, 1), 1) has unit scale; broadcast at use site).
    """
    C, k = table.shape
    B = y.shape[0]
    # PyTorch F.one_hot raises on out-of-range labels; clamp defensively so the
    # in-kernel one-hot compare matches the previous (clamped) semantics.
    y_idx = jnp.clip(y.astype(jnp.int32), 0, C - 1)

    # Pick a batch block size: multiple of 8 (sublane rule), capped at block_b.
    tb = min(block_b, -(-B // 8) * 8)
    tb = -(-tb // 8) * 8
    b_pad = -(-B // tb) * tb
    if b_pad != B:
        y_idx = jnp.pad(y_idx, (0, b_pad - B))            # padded labels -> row 0
    y2 = y_idx.reshape(b_pad, 1)

    mu_pad = pl.pallas_call(
        _onehot_matmul_kernel,
        out_shape=jax.ShapeDtypeStruct((b_pad, k), jnp.float32),
        grid_spec=pltpu.PrefetchScalarGridSpec(
            num_scalar_prefetch=0,
            grid=(b_pad // tb,),
            in_specs=[
                pl.BlockSpec((tb, 1), lambda i: (i, 0)),   # label block
                pl.BlockSpec((C, k), lambda i: (0, 0)),    # resident table
            ],
            out_specs=pl.BlockSpec((tb, k), lambda i: (i, 0)),
        ),
        compiler_params=pltpu.CompilerParams(
            # Independent batch blocks -> parallel axis (2-TC split on v7x).
            dimension_semantics=("parallel",),
        ),
    )(y2, table)

    mu = mu_pad[:B]
    # TODO(synk): torch.distributions.Independent(Normal(mu, 1), 1) has no
    # Pallas/JAX-array equivalent; return (mu, scale=1.0) as its parameters
    # (scale kept as a lazy scalar constant instead of materializing ones).
    scale = 1.0
    return (mu, scale), mu


if __name__ == "__main__":
    key = jax.random.PRNGKey(0)
    B = 8            # batch of labels
    num_classes = 16
    k = 32           # stochastic Gaussian dimension

    ky, kw, kb = jax.random.split(key, 3)
    y = jax.random.randint(ky, (B,), 0, num_classes, dtype=jnp.int32)

    # Deterministic nn.Linear-style init: U(-1/sqrt(C), 1/sqrt(C))
    bound = 1.0 / jnp.sqrt(jnp.float32(num_classes))
    weight = jax.random.uniform(kw, (k, num_classes), jnp.float32, -bound, bound)
    bias = jax.random.uniform(kb, (k,), jnp.float32, -bound, bound)

    # One-time param prep (constant layout + bias fold), then the kernel call.
    table = prepare_backwards_encoder_params(weight, bias)
    (mu_param, scale_param), backwards_mu = backwards_encoder(y, table)
    backwards_mu = jax.block_until_ready(backwards_mu)

    # Reference check in plain JAX: one_hot @ W^T + b
    one_hot_ref = jax.nn.one_hot(y, num_classes, dtype=jnp.float32)
    mu_ref = one_hot_ref @ weight.T + bias
    assert backwards_mu.shape == (B, k)
    assert jnp.allclose(backwards_mu, mu_ref, atol=1e-5), "mismatch vs reference"
    assert scale_param == 1.0

    print("KERNEL_OK")
</pallas_src>

<mosaic_0001>
module attributes {stable_mosaic.version = 11 : i64} {
  func.func @_onehot_matmul_kernel(%arg0: i32, %arg1: memref<8x1xi32, #tpu.memory_space<vmem>>, %arg2: memref<16x32xf32, #tpu.memory_space<vmem>>, %arg3: memref<8x32xf32, #tpu.memory_space<vmem>>) attributes {dimension_semantics = [#tpu.dimension_semantics<parallel>], iteration_bounds = array<i64: 1>, scalar_prefetch = 0 : i64, scratch_operands = 0 : i64, tpu.core_type = #tpu.core_type<tc>, window_params = [{transform_indices = @transform_0, window_bounds = array<i64: 8, 1>}, {pipeline_mode = #tpu.pipeline_mode<synchronous>, transform_indices = @transform_1, window_bounds = array<i64: 16, 32>}, {transform_indices = @transform_2, window_bounds = array<i64: 8, 32>}]} {
    %c0 = arith.constant 0 : index
    %c0_0 = arith.constant 0 : index
    %0 = vector.load %arg1[%c0, %c0_0] : memref<8x1xi32, #tpu.memory_space<vmem>>, vector<8x1xi32>
    %1 = tpu.iota {dimensions = array<i32: 1>} : vector<8x16xi32>
    %2 = vector.broadcast %0 : vector<8x1xi32> to vector<8x16xi32>
    %3 = arith.cmpi eq, %1, %2 : vector<8x16xi32>
    %4 = arith.extui %3 : vector<8x16xi1> to vector<8x16xi32>
    %5 = arith.sitofp %4 : vector<8x16xi32> to vector<8x16xf32>
    %c0_1 = arith.constant 0 : index
    %c0_2 = arith.constant 0 : index
    %6 = vector.load %arg2[%c0_1, %c0_2] : memref<16x32xf32, #tpu.memory_space<vmem>>, vector<16x32xf32>
    %cst = arith.constant dense<0.000000e+00> : vector<8x32xf32>
    %7 = tpu.matmul %5, %6, %cst {dimension_numbers = #tpu.dot_dimension_numbers<[1], [0], [0], [1], [0, 0, 1, 1], [], []>} : vector<8x16xf32>, vector<16x32xf32>, vector<8x32xf32> -> vector<8x32xf32>
    %c0_3 = arith.constant 0 : index
    %c0_4 = arith.constant 0 : index
    %8 = vector.load %arg3[%c0_3, %c0_4] : memref<8x32xf32, #tpu.memory_space<vmem>>, vector<8x32xf32>
    tpu.vector_store %arg3[%c0_3, %c0_4], %7 {strides = array<i32>} : memref<8x32xf32, #tpu.memory_space<vmem>>, vector<8x32xf32>,
    return
  }
  func.func @transform_0(%arg0: i32) -> (i32, i32) {
    %c0_i32 = arith.constant 0 : i32
    %c0_i32_0 = arith.constant 0 : i32
    return %arg0, %c0_i32 : i32, i32
  }
  func.func @transform_1(%arg0: i32) -> (i32, i32) {
    %c0_i32 = arith.constant 0 : i32
    %c0_i32_0 = arith.constant 0 : i32
    %c0_i32_1 = arith.constant 0 : i32
    return %c0_i32, %c0_i32_0 : i32, i32
  }
  func.func @transform_2(%arg0: i32) -> (i32, i32) {
    %c0_i32 = arith.constant 0 : i32
    %c0_i32_0 = arith.constant 0 : i32
    return %arg0, %c0_i32 : i32, i32
  }
}

</mosaic_0001>

<llo_original>
// kernel: tpu_custom_call.1
$region0: #{tpu_custom_call.1}
  #allocation0 [shape = 'u32[]', space=smem, size = 0x4, offset = 0x4, fixed_abs, tag = 'smem constant byte address 0x4 - core index']
  #allocation1 [shape = 'u32[72,128]{1,0:T(1,128)}', space=vmem, size = 0x9000, scoped, tag = 'internal scratch']
  %s0 = inlined_call_operand.vmem [shape: s32[8,1], index: 0, kind: input, shape index: {}]
  %s1 = inlined_call_operand.hbm [shape: f32[16,32], index: 1, kind: input, shape index: {}]
  %s2 = inlined_call_operand.hbm [shape: f32[8,32], index: 2, kind: output, shape index: {}]
  %s3 = sld [smem:[#allocation0]]
  $region22: #{tpu_custom_call.1} parent=0
    _
  %s5 = ssub.s32 1, %s3
  %s6 = scalar_select 0, %s5, %s3
  $region1: #{tpu_custom_call.1} parent=0
    #allocation2 [shape = 'u8[8192]{0}', space=vmem, size = 0x2000, scoped, tag = 'input window, operand 1, single buffered']
    #allocation3 [shape = 's32[1]{0}', space=sflag, size = 0x4, scoped, tag = 'scoped memory for tpu_custom_call.1']
    #allocation4 [shape = 's32[1]{0}', space=sflag, size = 0x4, scoped, tag = 'scoped memory for tpu_custom_call.1']
    #allocation5 [shape = 'u8[4096]{0}', space=vmem, size = 0x1000, scoped, tag = 'output window, operand 0, single buffered']
    %7 = vsyncpa [#allocation3], 0
    %8 = vsyncpa [#allocation4], 0
    // Predicated region
    $region2: #{tpu_custom_call.1} parent=1 // pred_check
      _
    $region3: #{tpu_custom_call.1} parent=1 // pred_check_branch
      %10 = sbr.rel (0) target = $region5
    $region4: #{tpu_custom_call.1} parent=1 // pred_region
      _
    $region5: #{tpu_custom_call.1} parent=1 // pred_fallthru
      _
    // Predicated region
    $region6: #{tpu_custom_call.1} parent=1 // pred_check
      _
    $region7: #{tpu_custom_call.1} parent=1 // pred_check_branch
      %12 = sbr.rel (0) target = $region9
    $region8: #{tpu_custom_call.1} parent=1 // pred_region
      %14 = vsyncadd [#allocation3], 0
      %s15 = sshll.u32 %s1, 4
      %s16 = int_to_ptr.hbm [resolvable:$true] %s15
      %s17 = sshll.u32 [#allocation2], 4
      %s18 = int_to_ptr.vmem [resolvable:$true] %s17
      %23 = dma.hbm_to_vmem [thread:$0]  %s16, 256, %s18, [#allocation3], 128, 128, 8
    $region9: #{tpu_custom_call.1} parent=1 // pred_fallthru
      _
    // Predicated region
    $region10: #{tpu_custom_call.1} parent=1 // pred_check
      _
    $region11: #{tpu_custom_call.1} parent=1 // pred_check_branch
      %25 = sbr.rel (0) target = $region13
    $region12: #{tpu_custom_call.1} parent=1 // pred_region
      %27 = dma.done [#allocation3], 256
    $region13: #{tpu_custom_call.1} parent=1 // pred_fallthru
      _
    %v28 = vld [vmem:[%s0] sm:$0xff]
    %v29 = vlaneseq
    %v30 = vand.u32 %v29, 127
    %31 = vset.pattern.permute.xlu0 0
    %32 = vperm.xlu0 %31, %v28
    %v33 = vpop.permute.xlu0 %32
    %vm34 = vcmp.eq.s32.totalorder %v30, %v33
    %v35 = vsel %vm34, 1, 0
    %v36 = vcvt.s32.f32 %v35
    %v37 = vld [vmem:[#allocation2] sm:$0xff]
    %v38 = vld [vmem:[#allocation2 + $0x8] sm:$0xff]
    %vm39 = vcmask 130048
    %v41 = vsel %vm39, %v36, 0
    %43 = vmatpush.msra.mxu0 0.0
    %44 = vmatpush.msra.mxu0 0.0
    %45 = vmatpush.msra.mxu0 0.0
    %46 = vmatpush.msra.mxu0 0.0
    %47 = vmatpush.msra.mxu0 0.0
    %48 = vmatpush.msra.mxu0 0.0
    %49 = vmatpush.msra.mxu0 0.0
    %50 = vmatpush.msra.mxu0 0.0
    %51 = vmatpush.msra.mxu0 0.0
    %52 = vmatpush.msra.mxu0 0.0
    %53 = vmatpush.msra.mxu0 0.0
    %54 = vmatpush.msra.mxu0 0.0
    %55 = vmatpush.msra.mxu0 0.0
    %56 = vmatpush.msra.mxu0 0.0
    %57 = vmatpush.msra.mxu0 %v38
    %58 = vmatpush.msra.mxu0 %v37
    %59 = vmatmul.f32.gmra.mxu0 %v41
    %v60 = vpop.f32.mrf.mxu0
    %v61 = vadd.f32 0.0, %v60
    %62 = vdwg.mxu0
    %vm63 = vcmask 261120
    %64 = vst.msk [vmem:[#allocation5] sm:$0xff] %vm63, %v61
    // Predicated region
    $region14: #{tpu_custom_call.1} parent=1 // pred_check
      _
    $region15: #{tpu_custom_call.1} parent=1 // pred_check_branch
      %66 = sbr.rel (0) target = $region17
    $region16: #{tpu_custom_call.1} parent=1 // pred_region
      %68 = vsyncadd [#allocation4], 0
      %s70 = sshll.u32 [#allocation5], 4
      %s71 = int_to_ptr.vmem [resolvable:$true] %s70
      %s72 = sshll.u32 %s2, 4
      %s73 = int_to_ptr.hbm [resolvable:$true] %s72
      %75 = dma.vmem_to_hbm [thread:$0]  %s71, 128, %s73, [#allocation4]
    $region17: #{tpu_custom_call.1} parent=1 // pred_fallthru
      _
    // Predicated region
    $region18: #{tpu_custom_call.1} parent=1 // pred_check
      _
    $region19: #{tpu_custom_call.1} parent=1 // pred_check_branch
      %77 = sbr.rel (0) target = $region21
    $region20: #{tpu_custom_call.1} parent=1 // pred_region
      %79 = dma.done [#allocation4], 128
    $region21: #{tpu_custom_call.1} parent=1 // pred_fallthru
      _
    %80 = vsyncpa [#allocation3], 1
    %81 = vsyncpa [#allocation4], 1

</llo_original>
